<compile_context>
chip_gen: v6e
topology: v6e:2x2x1
jax: 0.10.0
libtpu: 0.0.40
codegen_flags: <defaults>
</compile_context>

<pallas_src>
import functools

import jax
import jax.numpy as jnp
from jax.experimental import pallas as pl
from jax.experimental.pallas import tpu as pltpu


def _so3exp_kernel(x_ref, o_ref, *, eps):
    # x_ref: (3, S, 128)  -- component-major exponential coordinates
    # o_ref: (9, S, 128)  -- rows are R00,R01,R02,R10,R11,R12,R20,R21,R22
    wx = x_ref[0]                           # (S, 128), fully dense vregs
    wy = x_ref[1]
    wz = x_ref[2]

    wx2 = wx * wx
    wy2 = wy * wy
    wz2 = wz * wz
    th2 = wx2 + wy2 + wz2                   # theta^2

    big = th2 > (eps * eps)                 # same branch as theta > eps (theta >= 0)
    inv_t = jax.lax.rsqrt(jnp.where(big, th2, 1.0))   # 1/theta (EUP rsqrt)
    theta = th2 * inv_t                     # == sqrt(theta^2) when big
    inv_t2 = inv_t * inv_t

    # Small-angle branch (theta <= eps): A -> 1, Bc -> 0  (R = I + [w]x), as in the
    # reference module.  Bc = (1 - cos_clamped) * inv_t2 is exactly 0 there.
    A = jnp.where(big, jnp.sin(theta) * inv_t, 1.0)
    c = jnp.where(big, jnp.cos(theta), 1.0)
    Bc = (1.0 - c) * inv_t2

    # Hoisted shared products for the 9 entries.
    Bxy = Bc * (wx * wy)
    Bxz = Bc * (wx * wz)
    Byz = Bc * (wy * wz)
    Awx = A * wx
    Awy = A * wy
    Awz = A * wz

    # R = I + A*[w]x + Bc*[w]x^2 ; diagonal uses cos + Bc*w_i^2 (Bc*theta^2 = 1-cos).
    o_ref[0] = c + Bc * wx2
    o_ref[1] = Bxy - Awz
    o_ref[2] = Bxz + Awy
    o_ref[3] = Bxy + Awz
    o_ref[4] = c + Bc * wy2
    o_ref[5] = Byz - Awx
    o_ref[6] = Bxz - Awy
    o_ref[7] = Byz + Awx
    o_ref[8] = c + Bc * wz2


def so3_exp(x, eps=1e-8, block_b=65536, component_major=False):
    """x: (B, 3) axis-angle -> (B, 3, 3) rotation matrices (float32 compute).

    If component_major=True, returns the raw (9, B) slab (rows R00..R22) and skips
    the output transpose (for consumers that can fuse the permute themselves).
    """
    assert x.ndim == 2 and x.shape[1] == 3
    B = x.shape[0]
    orig_dtype = x.dtype
    xf = x.astype(jnp.float32)              # kernel computes in f32 (sublane tiling, eps)

    # Pad B up to a multiple of 1024 so each block's sublane dim (S = tb//128) is a
    # multiple of 8; use >= 2 blocks when possible so both v7x TensorCores get work.
    Bp0 = pl.cdiv(B, 1024) * 1024
    n_blocks = max(pl.cdiv(Bp0, block_b), 2 if Bp0 >= 2048 else 1)
    tb = pl.cdiv(Bp0 // 1024, n_blocks) * 1024   # per-block batch, multiple of 1024
    Bp = n_blocks * tb
    S = tb // 128

    # Component-major, zero-padded, (sublane, lane)-dense input: (3, Bp//128, 128).
    # Padded rotations have theta = 0 -> small-angle branch -> no NaNs.
    xt = jnp.pad(xf.T, ((0, 0), (0, Bp - B))).reshape(3, Bp // 128, 128)

    out = pl.pallas_call(
        functools.partial(_so3exp_kernel, eps=float(eps)),
        out_shape=jax.ShapeDtypeStruct((9, Bp // 128, 128), jnp.float32),
        grid=(n_blocks,),
        in_specs=[pl.BlockSpec((3, S, 128), lambda i: (0, i, 0))],
        out_specs=pl.BlockSpec((9, S, 128), lambda i: (0, i, 0)),
        compiler_params=pltpu.CompilerParams(
            dimension_semantics=("parallel",),
        ),
        cost_estimate=pl.CostEstimate(
            flops=45 * Bp,
            transcendentals=3 * Bp,
            bytes_accessed=48 * Bp,
        ),
    )(xt)

    out9 = out.reshape(9, Bp)[:, :B]
    if component_major:
        return out9.astype(orig_dtype)
    # (9, B) -> (B, 9) -> (B, 3, 3), row-major, to match the module's output layout.
    return out9.T.reshape(B, 3, 3).astype(orig_dtype)


def _so3_exp_ref(x, eps=1e-8):
    """Pure-JAX reference mirroring the PyTorch module (for verification)."""
    B = x.shape[0]
    wx, wy, wz = x[:, 0], x[:, 1], x[:, 2]
    zero = jnp.zeros_like(wx)
    K = jnp.stack(
        [
            jnp.stack([zero, -wz, wy], axis=-1),
            jnp.stack([wz, zero, -wx], axis=-1),
            jnp.stack([-wy, wx, zero], axis=-1),
        ],
        axis=1,
    )
    K2 = jnp.einsum("bij,bjk->bik", K, K)
    theta = jnp.linalg.norm(x, axis=1)
    mask = (theta > eps).astype(x.dtype)
    safe = jnp.where(theta > eps, theta, jnp.ones_like(theta))
    A = mask * (jnp.sin(theta) / safe) + (1.0 - mask)
    Bc = mask * ((1.0 - jnp.cos(theta)) / (safe * safe))
    I = jnp.broadcast_to(jnp.eye(3, dtype=x.dtype), (B, 3, 3))
    return I + A[:, None, None] * K + Bc[:, None, None] * K2


if __name__ == "__main__":
    key = jax.random.PRNGKey(0)
    B = 8
    x = jax.random.normal(key, (B, 3), dtype=jnp.float32) * 2.0
    x = x.at[0].set(0.0)   # exercise the small-angle (identity) branch

    R = so3_exp(x)
    R = jax.block_until_ready(R)

    # Sanity checks: match reference and be (nearly) orthonormal.
    R_ref = _so3_exp_ref(x)
    assert jnp.allclose(R, R_ref, atol=1e-5), "mismatch vs reference"
    RRt = jnp.einsum("bij,bkj->bik", R, R)
    I = jnp.broadcast_to(jnp.eye(3, dtype=jnp.float32), (B, 3, 3))
    assert jnp.allclose(RRt, I, atol=1e-4), "R not orthonormal"

    print("KERNEL_OK")
</pallas_src>

<mosaic_0001>
module attributes {stable_mosaic.version = 11 : i64} {
  func.func @_so3exp_kernel(%arg0: i32, %arg1: memref<3x8x128xf32, #tpu.memory_space<vmem>>, %arg2: memref<9x8x128xf32, #tpu.memory_space<vmem>>) attributes {dimension_semantics = [#tpu.dimension_semantics<parallel>], iteration_bounds = array<i64: 1>, scalar_prefetch = 0 : i64, scratch_operands = 0 : i64, tpu.core_type = #tpu.core_type<tc>, window_params = [{transform_indices = @transform_0, window_bounds = array<i64: 3, 8, 128>}, {transform_indices = @transform_1, window_bounds = array<i64: 9, 8, 128>}]} {
    %c0 = arith.constant 0 : index
    %c0_0 = arith.constant 0 : index
    %c0_1 = arith.constant 0 : index
    %0 = vector.load %arg1[%c0, %c0_0, %c0_1] : memref<3x8x128xf32, #tpu.memory_space<vmem>>, vector<1x8x128xf32>
    %1 = vector.shape_cast %0 : vector<1x8x128xf32> to vector<8x128xf32>
    %c1 = arith.constant 1 : index
    %c0_2 = arith.constant 0 : index
    %c0_3 = arith.constant 0 : index
    %2 = vector.load %arg1[%c1, %c0_2, %c0_3] : memref<3x8x128xf32, #tpu.memory_space<vmem>>, vector<1x8x128xf32>
    %3 = vector.shape_cast %2 : vector<1x8x128xf32> to vector<8x128xf32>
    %c2 = arith.constant 2 : index
    %c0_4 = arith.constant 0 : index
    %c0_5 = arith.constant 0 : index
    %4 = vector.load %arg1[%c2, %c0_4, %c0_5] : memref<3x8x128xf32, #tpu.memory_space<vmem>>, vector<1x8x128xf32>
    %5 = vector.shape_cast %4 : vector<1x8x128xf32> to vector<8x128xf32>
    %6 = arith.mulf %1, %1 : vector<8x128xf32>
    %7 = arith.mulf %3, %3 : vector<8x128xf32>
    %8 = arith.mulf %5, %5 : vector<8x128xf32>
    %9 = arith.addf %6, %7 : vector<8x128xf32>
    %10 = arith.addf %9, %8 : vector<8x128xf32>
    %cst = arith.constant 1.000000e-16 : f32
    %11 = vector.broadcast %cst : f32 to vector<8x128xf32>
    %12 = arith.cmpf ogt, %10, %11 : vector<8x128xf32>
    %cst_6 = arith.constant 1.000000e+00 : f32
    %13 = vector.broadcast %cst_6 : f32 to vector<8x128xf32>
    %14 = arith.select %12, %10, %13 : vector<8x128xi1>, vector<8x128xf32>
    %15 = math.rsqrt %14 : vector<8x128xf32>
    %16 = arith.mulf %10, %15 : vector<8x128xf32>
    %17 = arith.mulf %15, %15 : vector<8x128xf32>
    %18 = math.sin %16 : vector<8x128xf32>
    %19 = arith.mulf %18, %15 : vector<8x128xf32>
    %cst_7 = arith.constant 1.000000e+00 : f32
    %20 = vector.broadcast %cst_7 : f32 to vector<8x128xf32>
    %21 = arith.select %12, %19, %20 : vector<8x128xi1>, vector<8x128xf32>
    %22 = math.cos %16 : vector<8x128xf32>
    %cst_8 = arith.constant 1.000000e+00 : f32
    %23 = vector.broadcast %cst_8 : f32 to vector<8x128xf32>
    %24 = arith.select %12, %22, %23 : vector<8x128xi1>, vector<8x128xf32>
    %cst_9 = arith.constant 1.000000e+00 : f32
    %25 = vector.broadcast %cst_9 : f32 to vector<8x128xf32>
    %26 = arith.subf %25, %24 : vector<8x128xf32>
    %27 = arith.mulf %26, %17 : vector<8x128xf32>
    %28 = arith.mulf %1, %3 : vector<8x128xf32>
    %29 = arith.mulf %27, %28 : vector<8x128xf32>
    %30 = arith.mulf %1, %5 : vector<8x128xf32>
    %31 = arith.mulf %27, %30 : vector<8x128xf32>
    %32 = arith.mulf %3, %5 : vector<8x128xf32>
    %33 = arith.mulf %27, %32 : vector<8x128xf32>
    %34 = arith.mulf %21, %1 : vector<8x128xf32>
    %35 = arith.mulf %21, %3 : vector<8x128xf32>
    %36 = arith.mulf %21, %5 : vector<8x128xf32>
    %37 = arith.mulf %27, %6 : vector<8x128xf32>
    %38 = arith.addf %24, %37 : vector<8x128xf32>
    %c0_10 = arith.constant 0 : index
    %c0_11 = arith.constant 0 : index
    %c0_12 = arith.constant 0 : index
    %39 = vector.load %arg2[%c0_10, %c0_11, %c0_12] : memref<9x8x128xf32, #tpu.memory_space<vmem>>, vector<1x8x128xf32>
    %40 = vector.shape_cast %39 : vector<1x8x128xf32> to vector<8x128xf32>
    %41 = vector.shape_cast %38 : vector<8x128xf32> to vector<1x8x128xf32>
    tpu.vector_store %arg2[%c0_10, %c0_11, %c0_12], %41 {strides = array<i32>} : memref<9x8x128xf32, #tpu.memory_space<vmem>>, vector<1x8x128xf32>,
    %42 = arith.subf %29, %36 : vector<8x128xf32>
    %c1_13 = arith.constant 1 : index
    %c0_14 = arith.constant 0 : index
    %c0_15 = arith.constant 0 : index
    %43 = vector.load %arg2[%c1_13, %c0_14, %c0_15] : memref<9x8x128xf32, #tpu.memory_space<vmem>>, vector<1x8x128xf32>
    %44 = vector.shape_cast %43 : vector<1x8x128xf32> to vector<8x128xf32>
    %45 = vector.shape_cast %42 : vector<8x128xf32> to vector<1x8x128xf32>
    tpu.vector_store %arg2[%c1_13, %c0_14, %c0_15], %45 {strides = array<i32>} : memref<9x8x128xf32, #tpu.memory_space<vmem>>, vector<1x8x128xf32>,
    %46 = arith.addf %31, %35 : vector<8x128xf32>
    %c2_16 = arith.constant 2 : index
    %c0_17 = arith.constant 0 : index
    %c0_18 = arith.constant 0 : index
    %47 = vector.load %arg2[%c2_16, %c0_17, %c0_18] : memref<9x8x128xf32, #tpu.memory_space<vmem>>, vector<1x8x128xf32>
    %48 = vector.shape_cast %47 : vector<1x8x128xf32> to vector<8x128xf32>
    %49 = vector.shape_cast %46 : vector<8x128xf32> to vector<1x8x128xf32>
    tpu.vector_store %arg2[%c2_16, %c0_17, %c0_18], %49 {strides = array<i32>} : memref<9x8x128xf32, #tpu.memory_space<vmem>>, vector<1x8x128xf32>,
    %50 = arith.addf %29, %36 : vector<8x128xf32>
    %c3 = arith.constant 3 : index
    %c0_19 = arith.constant 0 : index
    %c0_20 = arith.constant 0 : index
    %51 = vector.load %arg2[%c3, %c0_19, %c0_20] : memref<9x8x128xf32, #tpu.memory_space<vmem>>, vector<1x8x128xf32>
    %52 = vector.shape_cast %51 : vector<1x8x128xf32> to vector<8x128xf32>
    %53 = vector.shape_cast %50 : vector<8x128xf32> to vector<1x8x128xf32>
    tpu.vector_store %arg2[%c3, %c0_19, %c0_20], %53 {strides = array<i32>} : memref<9x8x128xf32, #tpu.memory_space<vmem>>, vector<1x8x128xf32>,
    %54 = arith.mulf %27, %7 : vector<8x128xf32>
    %55 = arith.addf %24, %54 : vector<8x128xf32>
    %c4 = arith.constant 4 : index
    %c0_21 = arith.constant 0 : index
    %c0_22 = arith.constant 0 : index
    %56 = vector.load %arg2[%c4, %c0_21, %c0_22] : memref<9x8x128xf32, #tpu.memory_space<vmem>>, vector<1x8x128xf32>
    %57 = vector.shape_cast %56 : vector<1x8x128xf32> to vector<8x128xf32>
    %58 = vector.shape_cast %55 : vector<8x128xf32> to vector<1x8x128xf32>
    tpu.vector_store %arg2[%c4, %c0_21, %c0_22], %58 {strides = array<i32>} : memref<9x8x128xf32, #tpu.memory_space<vmem>>, vector<1x8x128xf32>,
    %59 = arith.subf %33, %34 : vector<8x128xf32>
    %c5 = arith.constant 5 : index
    %c0_23 = arith.constant 0 : index
    %c0_24 = arith.constant 0 : index
    %60 = vector.load %arg2[%c5, %c0_23, %c0_24] : memref<9x8x128xf32, #tpu.memory_space<vmem>>, vector<1x8x128xf32>
    %61 = vector.shape_cast %60 : vector<1x8x128xf32> to vector<8x128xf32>
    %62 = vector.shape_cast %59 : vector<8x128xf32> to vector<1x8x128xf32>
    tpu.vector_store %arg2[%c5, %c0_23, %c0_24], %62 {strides = array<i32>} : memref<9x8x128xf32, #tpu.memory_space<vmem>>, vector<1x8x128xf32>,
    %63 = arith.subf %31, %35 : vector<8x128xf32>
    %c6 = arith.constant 6 : index
    %c0_25 = arith.constant 0 : index
    %c0_26 = arith.constant 0 : index
    %64 = vector.load %arg2[%c6, %c0_25, %c0_26] : memref<9x8x128xf32, #tpu.memory_space<vmem>>, vector<1x8x128xf32>
    %65 = vector.shape_cast %64 : vector<1x8x128xf32> to vector<8x128xf32>
    %66 = vector.shape_cast %63 : vector<8x128xf32> to vector<1x8x128xf32>
    tpu.vector_store %arg2[%c6, %c0_25, %c0_26], %66 {strides = array<i32>} : memref<9x8x128xf32, #tpu.memory_space<vmem>>, vector<1x8x128xf32>,
    %67 = arith.addf %33, %34 : vector<8x128xf32>
    %c7 = arith.constant 7 : index
    %c0_27 = arith.constant 0 : index
    %c0_28 = arith.constant 0 : index
    %68 = vector.load %arg2[%c7, %c0_27, %c0_28] : memref<9x8x128xf32, #tpu.memory_space<vmem>>, vector<1x8x128xf32>
    %69 = vector.shape_cast %68 : vector<1x8x128xf32> to vector<8x128xf32>
    %70 = vector.shape_cast %67 : vector<8x128xf32> to vector<1x8x128xf32>
    tpu.vector_store %arg2[%c7, %c0_27, %c0_28], %70 {strides = array<i32>} : memref<9x8x128xf32, #tpu.memory_space<vmem>>, vector<1x8x128xf32>,
    %71 = arith.mulf %27, %8 : vector<8x128xf32>
    %72 = arith.addf %24, %71 : vector<8x128xf32>
    %c8 = arith.constant 8 : index
    %c0_29 = arith.constant 0 : index
    %c0_30 = arith.constant 0 : index
    %73 = vector.load %arg2[%c8, %c0_29, %c0_30] : memref<9x8x128xf32, #tpu.memory_space<vmem>>, vector<1x8x128xf32>
    %74 = vector.shape_cast %73 : vector<1x8x128xf32> to vector<8x128xf32>
    %75 = vector.shape_cast %72 : vector<8x128xf32> to vector<1x8x128xf32>
    tpu.vector_store %arg2[%c8, %c0_29, %c0_30], %75 {strides = array<i32>} : memref<9x8x128xf32, #tpu.memory_space<vmem>>, vector<1x8x128xf32>,
    return
  }
  func.func @transform_0(%arg0: i32) -> (i32, i32, i32) {
    %c0_i32 = arith.constant 0 : i32
    %c0_i32_0 = arith.constant 0 : i32
    %c0_i32_1 = arith.constant 0 : i32
    return %c0_i32, %arg0, %c0_i32_0 : i32, i32, i32
  }
  func.func @transform_1(%arg0: i32) -> (i32, i32, i32) {
    %c0_i32 = arith.constant 0 : i32
    %c0_i32_0 = arith.constant 0 : i32
    %c0_i32_1 = arith.constant 0 : i32
    return %c0_i32, %arg0, %c0_i32_0 : i32, i32, i32
  }
}

</mosaic_0001>

<llo_original>
// kernel: tpu_custom_call.1
$region0: #{tpu_custom_call.1}
  #allocation0 [shape = 'u32[]', space=smem, size = 0x4, offset = 0x4, fixed_abs, tag = 'smem constant byte address 0x4 - core index']
  #allocation1 [shape = 'u32[144,128]{1,0:T(1,128)}', space=vmem, size = 0x12000, scoped, tag = 'internal scratch']
  %s0 = inlined_call_operand.hbm [shape: f32[3,8,128], index: 0, kind: input, shape index: {}]
  %s1 = inlined_call_operand.hbm [shape: f32[9,8,128], index: 1, kind: output, shape index: {}]
  %s2 = sld [smem:[#allocation0]]
  $region18: #{tpu_custom_call.1} parent=0
    _
  %s4 = ssub.s32 1, %s2
  %s5 = scalar_select 0, %s4, %s2
  $region1: #{tpu_custom_call.1} parent=0
    #allocation2 [shape = 'u8[12288]{0}', space=vmem, size = 0x3000, scoped, tag = 'input window, operand 0, single buffered']
    #allocation3 [shape = 's32[1]{0}', space=sflag, size = 0x4, scoped, tag = 'scoped memory for tpu_custom_call.1']
    #allocation4 [shape = 's32[1]{0}', space=sflag, size = 0x4, scoped, tag = 'scoped memory for tpu_custom_call.1']
    #allocation5 [shape = 'u8[36864]{0}', space=vmem, size = 0x9000, scoped, tag = 'output window, operand 0, single buffered']
    %6 = vsyncpa [#allocation3], 0
    %7 = vsyncpa [#allocation4], 0
    // Predicated region
    $region2: #{tpu_custom_call.1} parent=1 // pred_check
      _
    $region3: #{tpu_custom_call.1} parent=1 // pred_check_branch
      %9 = sbr.rel (0) target = $region5
    $region4: #{tpu_custom_call.1} parent=1 // pred_region
      %s11 = ssub.s32 384, 384
      %12 = vsyncadd [#allocation3], %s11
      %s13 = sshll.u32 [#allocation2], 4
      %s14 = int_to_ptr.vmem [resolvable:$true] %s13
      %19 = dma.hbm_to_vmem [thread:$0]  %s0, 384, %s14, [#allocation3], 128, 128, 8
    $region5: #{tpu_custom_call.1} parent=1 // pred_fallthru
      _
    // Predicated region
    $region6: #{tpu_custom_call.1} parent=1 // pred_check
      _
    $region7: #{tpu_custom_call.1} parent=1 // pred_check_branch
      %21 = sbr.rel (0) target = $region9
    $region8: #{tpu_custom_call.1} parent=1 // pred_region
      %22 = dma.done [#allocation3], 384
    $region9: #{tpu_custom_call.1} parent=1 // pred_fallthru
      _
    %v23 = vld [vmem:[#allocation2] sm:$0xff]
    %s24 = scalar_lea.vmem [#allocation2], 8
    %v25 = vld [vmem:[%s24] sm:$0xff]
    %s26 = scalar_lea.vmem [#allocation2], 16
    %v27 = vld [vmem:[%s26] sm:$0xff]
    %v28 = vmul.f32 %v23, %v23
    %v29 = vmul.f32 %v25, %v25
    %v30 = vmul.f32 %v27, %v27
    %v31 = vadd.f32 %v28, %v29
    %v32 = vadd.f32 %v31, %v30
    %vm33 = vcmp.gt.f32.partialorder %v32, 1e-16
    %v34 = vsel %vm33, %v32, 1.0
    %v35 = vrsqrt.pop %v34
    %v36 = vmul.f32 %v32, %v35
    %v37 = vmul.f32 %v35, %v35
    %v38 = vand.u32 2147483647, %v36
    %vm39 = vcmp.le.f32.partialorder %v38, 0.7853982
    %vm40 = vcmp.lt.s32.totalorder %v36, 0
    %v41 = vand.u32 %v36, 2139095040
    %v42 = vshrl.u32 %v41, 23
    %v43 = vsub.s32 %v42, 127
    %v44 = vand.u32 2147483647, %v36
    %v45 = vand.u32 %v44, 8388607
    %v46 = vor.u32 %v45, 8388608
    %v47 = vsub.s32 0, %v46
    %v48 = vadd.s32 %v43, 1
    %vm49 = vcmp.gt.s32.totalorder %v48, 0
    %v50 = vsel %vm49, %v48, 0
    %v51 = vshrl.u32 %v50, 5
    %v52 = vand.u32 %v50, 31
    %v53 = vsub.s32 32, %v52
    %v54 = vshrl.u32 683565275, %v53
    %v55 = vshll.u32 683565275, %v52
    %v56 = vshrl.u32 2475754826, %v53
    %v57 = vor.u32 %v55, %v56
    %v58 = vshll.u32 2475754826, %v52
    %v59 = vshrl.u32 2131351028, %v53
    %v60 = vor.u32 %v58, %v59
    %v61 = vshll.u32 2131351028, %v52
    %v62 = vshrl.u32 2102212464, %v53
    %v63 = vor.u32 %v61, %v62
    %v64 = vshll.u32 2102212464, %v52
    %v65 = vshrl.u32 920167782, %v53
    %v66 = vor.u32 %v64, %v65
    %v67 = vshll.u32 920167782, %v52
    %v68 = vshrl.u32 1326507024, %v53
    %v69 = vor.u32 %v67, %v68
    %vm70 = vcmp.lt.s32.totalorder %v51, 1
    %vm71 = vcmp.lt.s32.totalorder %v51, 2
    %vm72 = vcmp.lt.s32.totalorder %v51, 3
    %vm73 = vcmp.lt.s32.totalorder %v51, 4
    %v74 = vsel %vm70, %v54, %v57
    %v75 = vsel %vm73, %v63, 2102212464
    %v76 = vsel %vm72, %v60, %v75
    %v77 = vsel %vm71, %v74, %v76
    %v78 = vsel %vm70, %v57, %v60
    %v79 = vsel %vm73, %v66, 920167782
    %v80 = vsel %vm72, %v63, %v79
    %v81 = vsel %vm71, %v78, %v80
    %v82 = vsel %vm70, %v60, %v63
    %v83 = vsel %vm73, %v69, 1326507024
    %v84 = vsel %vm72, %v66, %v83
    %v85 = vsel %vm71, %v82, %v84
    %v86 = vshll.u32 %v46, 8
    %v87 = vmul.u32.u64.compose %v86, %v85
    %v88 = vextract.low.u32 %v87
    %v89 = vextract.high.u32 %v87
    %v90 = vmul.u32.u64.compose %v86, %v81
    %v91 = vextract.low.u32 %v90
    %v92 = vextract.high.u32 %v90
    %v93 = vmul.u32 %v86, %v77
    %v94 = vadd.s32 %v89, %v91
    %vm95 = vc.u32 %v89, %v91
    %v96 = vadd.s32 %v92, 1
    %v97 = vsel %vm95, %v96, %v92
    %v98 = vadd.s32 %v93, %v97
    %v99 = vadd.s32 %v98, 536870912
    %v100 = vshrl.u32 %v99, 30
    %v101 = vshll.u32 %v100, 30
    %v102 = vsub.s32 %v98, %v101
    %vm103 = vcmp.lt.s32.totalorder %v102, 0
    %v104 = vsub.s32 0, %v102
    %v105 = vsel %vm103, %v104, %v102
    %v106 = vclz %v105
    %v107 = vsub.s32 %v106, 2
    %vm108 = vcmp.gt.s32.totalorder 0, %v107
    %v109 = vsel %vm108, 0, %v107
    %v110 = vsub.s32 32, %v109
    %v111 = vshll.u32 %v102, %v109
    %v112 = vshrl.u32 %v94, %v110
    %v113 = vor.u32 %v111, %v112
    %v114 = vsub.s32 4294967266, %v109
    %v115 = vadd.s32 %v114, 127
    %v116 = vshll.u32 %v115, 23
    %v117 = vor.u32 4788187, %v116
    %v118 = vand.u32 2147483647, %v117
    %v120 = vcvt.s32.f32 %v113
    %v121 = vmul.f32 %v120, %v118
    %v122 = vxor.u32 %v121, 2147483648
    %v123 = vsel %vm40, %v122, %v121
    %v124 = vsub.s32 4, %v100
    %v125 = vsel %vm40, %v124, %v100
    %v126 = vsel %vm39, %v36, %v123
    %v127 = vsel %vm39, 0, %v125
    %v128 = vcosq.f32.pop %v126
    %v129 = vsinq.f32.pop %v126
    %vm130 = vweird.f32 %v36
    %v131 = vadd.s32 %v127, 3
    %v132 = vand.u32 %v131, 3
    %vm133 = vcmp.lt.s32.totalorder %v132, 2
    %vm134 = vcmp.eq.s32.totalorder %v132, 0
    %v135 = vxor.u32 %v129, 2147483648
    %v136 = vsel %vm134, %v128, %v135
    %vm137 = vcmp.eq.s32.totalorder %v132, 2
    %v138 = vxor.u32 %v128, 2147483648
    %v139 = vsel %vm137, %v138, %v129
    %v140 = vsel %vm133, %v136, %v139
    %v141 = vsel %vm130, nan, %v140
    %v142 = vmul.f32 %v141, %v35
    %v143 = vsel %vm33, %v142, 1.0
    %v144 = vand.u32 2147483647, %v36
    %vm145 = vcmp.le.f32.partialorder %v144, 0.7853982
    %vm146 = vcmp.lt.s32.totalorder %v36, 0
    %v147 = vand.u32 %v36, 2139095040
    %v148 = vshrl.u32 %v147, 23
    %v149 = vsub.s32 %v148, 127
    %v150 = vand.u32 2147483647, %v36
    %v151 = vand.u32 %v150, 8388607
    %v152 = vor.u32 %v151, 8388608
    %v153 = vsub.s32 0, %v152
    %v154 = vadd.s32 %v149, 1
    %vm155 = vcmp.gt.s32.totalorder %v154, 0
    %v156 = vsel %vm155, %v154, 0
    %v157 = vshrl.u32 %v156, 5
    %v158 = vand.u32 %v156, 31
    %v159 = vsub.s32 32, %v158
    %v160 = vshrl.u32 683565275, %v159
    %v161 = vshll.u32 683565275, %v158
    %v162 = vshrl.u32 2475754826, %v159
    %v163 = vor.u32 %v161, %v162
    %v164 = vshll.u32 2475754826, %v158
    %v165 = vshrl.u32 2131351028, %v159
    %v166 = vor.u32 %v164, %v165
    %v167 = vshll.u32 2131351028, %v158
    %v168 = vshrl.u32 2102212464, %v159
    %v169 = vor.u32 %v167, %v168
    %v170 = vshll.u32 2102212464, %v158
    %v171 = vshrl.u32 920167782, %v159
    %v172 = vor.u32 %v170, %v171
    %v173 = vshll.u32 920167782, %v158
    %v174 = vshrl.u32 1326507024, %v159
    %v175 = vor.u32 %v173, %v174
    %vm176 = vcmp.lt.s32.totalorder %v157, 1
    %vm177 = vcmp.lt.s32.totalorder %v157, 2
    %vm178 = vcmp.lt.s32.totalorder %v157, 3
    %vm179 = vcmp.lt.s32.totalorder %v157, 4
    %v180 = vsel %vm176, %v160, %v163
    %v181 = vsel %vm179, %v169, 2102212464
    %v182 = vsel %vm178, %v166, %v181
    %v183 = vsel %vm177, %v180, %v182
    %v184 = vsel %vm176, %v163, %v166
    %v185 = vsel %vm179, %v172, 920167782
    %v186 = vsel %vm178, %v169, %v185
    %v187 = vsel %vm177, %v184, %v186
    %v188 = vsel %vm176, %v166, %v169
    %v189 = vsel %vm179, %v175, 1326507024
    %v190 = vsel %vm178, %v172, %v189
    %v191 = vsel %vm177, %v188, %v190
    %v192 = vshll.u32 %v152, 8
    %v193 = vmul.u32.u64.compose %v192, %v191
    %v194 = vextract.low.u32 %v193
    %v195 = vextract.high.u32 %v193
    %v196 = vmul.u32.u64.compose %v192, %v187
    %v197 = vextract.low.u32 %v196
    %v198 = vextract.high.u32 %v196
    %v199 = vmul.u32 %v192, %v183
    %v200 = vadd.s32 %v195, %v197
    %vm201 = vc.u32 %v195, %v197
    %v202 = vadd.s32 %v198, 1
    %v203 = vsel %vm201, %v202, %v198
    %v204 = vadd.s32 %v199, %v203
    %v205 = vadd.s32 %v204, 536870912
    %v206 = vshrl.u32 %v205, 30
    %v207 = vshll.u32 %v206, 30
    %v208 = vsub.s32 %v204, %v207
    %vm209 = vcmp.lt.s32.totalorder %v208, 0
    %v210 = vsub.s32 0, %v208
    %v211 = vsel %vm209, %v210, %v208
    %v212 = vclz %v211
    %v213 = vsub.s32 %v212, 2
    %vm214 = vcmp.gt.s32.totalorder 0, %v213
    %v215 = vsel %vm214, 0, %v213
    %v216 = vsub.s32 32, %v215
    %v217 = vshll.u32 %v208, %v215
    %v218 = vshrl.u32 %v200, %v216
    %v219 = vor.u32 %v217, %v218
    %v220 = vsub.s32 4294967266, %v215
    %v221 = vadd.s32 %v220, 127
    %v222 = vshll.u32 %v221, 23
    %v223 = vor.u32 4788187, %v222
    %v224 = vand.u32 2147483647, %v223
    %v226 = vcvt.s32.f32 %v219
    %v227 = vmul.f32 %v226, %v224
    %v228 = vxor.u32 %v227, 2147483648
    %v229 = vsel %vm146, %v228, %v227
    %v230 = vsub.s32 4, %v206
    %v231 = vsel %vm146, %v230, %v206
    %v232 = vsel %vm145, %v36, %v229
    %v233 = vsel %vm145, 0, %v231
    %v234 = vcosq.f32.pop %v232
    %v235 = vsinq.f32.pop %v232
    %vm236 = vweird.f32 %v36
    %v237 = vand.u32 %v233, 3
    %vm238 = vcmp.lt.s32.totalorder %v237, 2
    %vm239 = vcmp.eq.s32.totalorder %v237, 0
    %v240 = vxor.u32 %v235, 2147483648
    %v241 = vsel %vm239, %v234, %v240
    %vm242 = vcmp.eq.s32.totalorder %v237, 2
    %v243 = vxor.u32 %v234, 2147483648
    %v244 = vsel %vm242, %v243, %v235
    %v245 = vsel %vm238, %v241, %v244
    %v246 = vsel %vm236, nan, %v245
    %v247 = vsel %vm33, %v246, 1.0
    %v248 = vsub.f32 1.0, %v247
    %v249 = vmul.f32 %v248, %v37
    %v250 = vmul.f32 %v23, %v25
    %v251 = vmul.f32 %v249, %v250
    %v252 = vmul.f32 %v23, %v27
    %v253 = vmul.f32 %v249, %v252
    %v254 = vmul.f32 %v25, %v27
    %v255 = vmul.f32 %v249, %v254
    %v256 = vmul.f32 %v143, %v23
    %v257 = vmul.f32 %v143, %v25
    %v258 = vmul.f32 %v143, %v27
    %v259 = vmul.f32 %v249, %v28
    %v260 = vadd.f32 %v247, %v259
    %261 = vst [vmem:[#allocation5] sm:$0xff] %v260
    %v262 = vsub.f32 %v251, %v258
    %s263 = scalar_lea.vmem [#allocation5], 8
    %264 = vst [vmem:[%s263] sm:$0xff] %v262
    %v265 = vadd.f32 %v253, %v257
    %s266 = scalar_lea.vmem [#allocation5], 16
    %267 = vst [vmem:[%s266] sm:$0xff] %v265
    %v268 = vadd.f32 %v251, %v258
    %s269 = scalar_lea.vmem [#allocation5], 24
    %270 = vst [vmem:[%s269] sm:$0xff] %v268
    %v271 = vmul.f32 %v249, %v29
    %v272 = vadd.f32 %v247, %v271
    %s273 = scalar_lea.vmem [#allocation5], 32
    %274 = vst [vmem:[%s273] sm:$0xff] %v272
    %v275 = vsub.f32 %v255, %v256
    %s276 = scalar_lea.vmem [#allocation5], 40
    %277 = vst [vmem:[%s276] sm:$0xff] %v275
    %v278 = vsub.f32 %v253, %v257
    %s279 = scalar_lea.vmem [#allocation5], 48
    %280 = vst [vmem:[%s279] sm:$0xff] %v278
    %v281 = vadd.f32 %v255, %v256
    %s282 = scalar_lea.vmem [#allocation5], 56
    %283 = vst [vmem:[%s282] sm:$0xff] %v281
    %v284 = vmul.f32 %v249, %v30
    %v285 = vadd.f32 %v247, %v284
    %s286 = scalar_lea.vmem [#allocation5], 64
    %287 = vst [vmem:[%s286] sm:$0xff] %v285
    // Predicated region
    $region10: #{tpu_custom_call.1} parent=1 // pred_check
      _
    $region11: #{tpu_custom_call.1} parent=1 // pred_check_branch
      %289 = sbr.rel (0) target = $region13
    $region12: #{tpu_custom_call.1} parent=1 // pred_region
      %s291 = ssub.s32 1152, 1152
      %292 = vsyncadd [#allocation4], %s291
      %s293 = sshll.u32 [#allocation5], 4
      %s294 = int_to_ptr.vmem [resolvable:$true] %s293
      %299 = dma.vmem_to_hbm [thread:$0]  %s294, 1152, %s1, [#allocation4], 128, 128, 8
    $region13: #{tpu_custom_call.1} parent=1 // pred_fallthru
      _
    // Predicated region
    $region14: #{tpu_custom_call.1} parent=1 // pred_check
      _
    $region15: #{tpu_custom_call.1} parent=1 // pred_check_branch
      %301 = sbr.rel (0) target = $region17
    $region16: #{tpu_custom_call.1} parent=1 // pred_region
      %302 = dma.done [#allocation4], 1152
    $region17: #{tpu_custom_call.1} parent=1 // pred_fallthru
      _
    %303 = vsyncpa [#allocation3], 1
    %304 = vsyncpa [#allocation4], 1

</llo_original>
